<compile_context>
chip_gen: v5e
topology: v5e:2x2
jax: 0.10.0
libtpu: 0.0.40
codegen_flags: <defaults>
</compile_context>

<pallas_src>
import functools
import numpy as np
import jax
import jax.numpy as jnp
from jax.experimental import pallas as pl
from jax.experimental.pallas import tpu as pltpu

_VMEM_LIMIT = 48 * 1024 * 1024   # > 32 MiB scoped default, < v7x 64 MiB physical
_LN_EPS = 1e-5


def _pick_tile(dim, candidates=(512, 256, 128)):
    """Largest MXU-friendly tile that exactly divides `dim` (else the full dim).

    256-multiples keep the v6e/v7x 256x256 MXU full; 128 is the v5e floor.
    Falling back to the full extent keeps the (8,128) BlockSpec rule satisfied
    for small shapes (block == full array dim).
    """
    for c in candidates:
        if dim % c == 0:
            return c
    return dim


# ----------------------------- tiled linear (bias) -----------------------------

def _linear_kernel(x_ref, w_ref, b_ref, o_ref, acc_ref):
    k = pl.program_id(2)

    @pl.when(k == 0)
    def _():
        acc_ref[...] = jnp.zeros_like(acc_ref)

    acc_ref[...] += jnp.dot(x_ref[...].astype(jnp.bfloat16), w_ref[...],
                            preferred_element_type=jnp.float32)

    @pl.when(k == pl.num_programs(2) - 1)
    def _():
        o_ref[...] = (acc_ref[...] + b_ref[...]).astype(o_ref.dtype)


def linear_pallas(x, w_bf16, b):
    M, K = x.shape
    N = w_bf16.shape[1]
    tm, tn, tk = _pick_tile(M), _pick_tile(N), _pick_tile(K)
    return pl.pallas_call(
        _linear_kernel,
        out_shape=jax.ShapeDtypeStruct((M, N), jnp.float32),
        grid=(M // tm, N // tn, K // tk),
        in_specs=[pl.BlockSpec((tm, tk), lambda i, j, k: (i, k)),
                  pl.BlockSpec((tk, tn), lambda i, j, k: (k, j)),
                  pl.BlockSpec((1, tn), lambda i, j, k: (0, j))],
        out_specs=pl.BlockSpec((tm, tn), lambda i, j, k: (i, j)),
        scratch_shapes=[pltpu.VMEM((tm, tn), jnp.float32)],
        compiler_params=pltpu.CompilerParams(
            dimension_semantics=("parallel", "parallel", "arbitrary"),
            vmem_limit_bytes=_VMEM_LIMIT),
        cost_estimate=pl.CostEstimate(
            flops=2 * M * N * K, transcendentals=0,
            bytes_accessed=4 * M * K + 2 * K * N + 4 * M * N),
    )(x, w_bf16, b.reshape(1, N))


# ------------------ tiled linear + residual + LayerNorm epilogue ------------------

def _linear_res_ln_kernel(x_ref, w_ref, b_ref, r_ref, g_ref, bb_ref, o_ref, acc_ref,
                          *, eps):
    k = pl.program_id(1)

    @pl.when(k == 0)
    def _():
        acc_ref[...] = jnp.zeros_like(acc_ref)

    acc_ref[...] += jnp.dot(x_ref[...].astype(jnp.bfloat16), w_ref[...],
                            preferred_element_type=jnp.float32)

    @pl.when(k == pl.num_programs(1) - 1)
    def _():
        y = acc_ref[...] + b_ref[...] + r_ref[...]
        mu = jnp.mean(y, axis=-1, keepdims=True)
        var = jnp.mean((y - mu) ** 2, axis=-1, keepdims=True)
        o_ref[...] = ((y - mu) * jax.lax.rsqrt(var + eps) * g_ref[...]
                      + bb_ref[...]).astype(o_ref.dtype)


def linear_residual_layernorm_pallas(x, w_bf16, b, resid, gamma, beta, eps=_LN_EPS):
    """out = LayerNorm((x @ W + b) + resid).  N is kept whole so LN fuses in."""
    M, K = x.shape
    N = w_bf16.shape[1]
    tm, tk = _pick_tile(M), _pick_tile(K)
    kernel = functools.partial(_linear_res_ln_kernel, eps=eps)
    return pl.pallas_call(
        kernel,
        out_shape=jax.ShapeDtypeStruct((M, N), jnp.float32),
        grid=(M // tm, K // tk),
        in_specs=[pl.BlockSpec((tm, tk), lambda i, k: (i, k)),
                  pl.BlockSpec((tk, N), lambda i, k: (k, 0)),
                  pl.BlockSpec((1, N), lambda i, k: (0, 0)),
                  pl.BlockSpec((tm, N), lambda i, k: (i, 0)),
                  pl.BlockSpec((1, N), lambda i, k: (0, 0)),
                  pl.BlockSpec((1, N), lambda i, k: (0, 0))],
        out_specs=pl.BlockSpec((tm, N), lambda i, k: (i, 0)),
        scratch_shapes=[pltpu.VMEM((tm, N), jnp.float32)],
        compiler_params=pltpu.CompilerParams(
            dimension_semantics=("parallel", "arbitrary"),
            vmem_limit_bytes=_VMEM_LIMIT),
        cost_estimate=pl.CostEstimate(
            flops=2 * M * N * K, transcendentals=0,
            bytes_accessed=4 * M * K + 2 * K * N + 8 * M * N),
    )(x, w_bf16, b.reshape(1, N), resid, gamma.reshape(1, N), beta.reshape(1, N))


# --------------- fused FFN: fc1 -> ReLU -> fc2 -> residual -> LayerNorm ---------------

def _ffn_kernel(x_ref, w1_ref, b1_ref, w2_ref, b2_ref, g_ref, bb_ref, o_ref, *, eps):
    x = x_ref[...]                                             # (tm, E) f32; also the residual
    h = jnp.dot(x.astype(jnp.bfloat16), w1_ref[...],
                preferred_element_type=jnp.float32) + b1_ref[...]
    h = jnp.maximum(h, 0.0)                                    # hidden tile stays in VMEM
    y = jnp.dot(h.astype(jnp.bfloat16), w2_ref[...],
                preferred_element_type=jnp.float32) + b2_ref[...]
    y = y + x                                                  # residual (= LN1 output)
    mu = jnp.mean(y, axis=-1, keepdims=True)
    var = jnp.mean((y - mu) ** 2, axis=-1, keepdims=True)
    o_ref[...] = ((y - mu) * jax.lax.rsqrt(var + eps) * g_ref[...]
                  + bb_ref[...]).astype(o_ref.dtype)


def ffn_residual_layernorm_pallas(x, w1_bf16, b1, w2_bf16, b2, gamma, beta, eps=_LN_EPS):
    M, E = x.shape
    F = w1_bf16.shape[1]
    tm = _pick_tile(M)
    kernel = functools.partial(_ffn_kernel, eps=eps)
    return pl.pallas_call(
        kernel,
        out_shape=jax.ShapeDtypeStruct((M, E), jnp.float32),
        grid=(M // tm,),
        in_specs=[pl.BlockSpec((tm, E), lambda i: (i, 0)),
                  pl.BlockSpec((E, F), lambda i: (0, 0)),
                  pl.BlockSpec((1, F), lambda i: (0, 0)),
                  pl.BlockSpec((F, E), lambda i: (0, 0)),
                  pl.BlockSpec((1, E), lambda i: (0, 0)),
                  pl.BlockSpec((1, E), lambda i: (0, 0)),
                  pl.BlockSpec((1, E), lambda i: (0, 0))],
        out_specs=pl.BlockSpec((tm, E), lambda i: (i, 0)),
        compiler_params=pltpu.CompilerParams(
            dimension_semantics=("parallel",),
            vmem_limit_bytes=_VMEM_LIMIT),
        cost_estimate=pl.CostEstimate(
            flops=4 * M * E * F, transcendentals=0,
            bytes_accessed=8 * M * E + 4 * E * F),
    )(x, w1_bf16, b1.reshape(1, F), w2_bf16, b2.reshape(1, E),
      gamma.reshape(1, E), beta.reshape(1, E))


# ----------------------------- Speech-MSA v2 core -----------------------------

def _speech_msa_kernel(qkv_ref, seg_ref, segT_ref, o_ref, *, num_heads, head_dim,
                       num_wtok, t_fea, expand, local_size, scaling, embed_dim):
    """All heads of one batch element per grid step.

    qkv_ref : (1, T, 3E)  -- heads are contiguous column slices (h*hd:(h+1)*hd),
                             exactly matching the PyTorch reshape, so no wrapper
                             transposes are needed.
    seg_ref : (nw, t_fea) -- 1.0 where feature position j belongs to group j//expand
    segT_ref: (t_fea, nw) -- transpose of the above (= position->group one-hot)
    o_ref   : (1, T, E)   -- single lane-dense block write.
    """
    E, hd, nw = embed_dim, head_dim, num_wtok
    qkv = qkv_ref[0]                                   # (T, 3E) f32
    seg = seg_ref[...]                                 # (nw, t_fea) f32 {0,1}
    segT = segT_ref[...]                               # (t_fea, nw)
    seg_b = seg > 0.5
    segT_b = segT > 0.5
    # number of zero-padded keys per group (F.pad(value=0) in the reference)
    pad_cnt = float(expand) - jnp.sum(seg, axis=-1, keepdims=True)   # (nw, 1)
    wpad = (local_size - 1) // 2

    head_outs = []
    for h in range(num_heads):
        q = qkv[:, h * hd:(h + 1) * hd] * scaling
        k = qkv[:, E + h * hd: E + (h + 1) * hd]
        v = qkv[:, 2 * E + h * hd: 2 * E + (h + 1) * hd]
        q_w, q_f = q[:nw], q[nw:]
        k_w, k_f = k[:nw], k[nw:]
        v_w, v_f = v[:nw], v[nw:]

        # ---- word-token attention over its own segment (+ self key + zero pads) ----
        s_self = jnp.sum(q_w * k_w, axis=-1, keepdims=True)                 # (nw, 1)
        s_seg = jax.lax.dot_general(q_w, k_f, (((1,), (1,)), ((), ())),
                                    preferred_element_type=jnp.float32)     # (nw, t_fea)
        s_seg = jnp.where(seg_b, s_seg, -jnp.inf)
        m = jnp.maximum(jnp.maximum(jnp.max(s_seg, axis=-1, keepdims=True),
                                    s_self), 0.0)                            # safe shift
        e_self = jnp.exp(s_self - m)
        p_seg = jnp.exp(s_seg - m)                                           # 0 off-segment
        denom = (e_self + jnp.sum(p_seg, axis=-1, keepdims=True)
                 + pad_cnt * jnp.exp(-m))                                    # zero-pad keys
        out_wtok = (e_self * v_w
                    + jnp.dot(p_seg, v_f, preferred_element_type=jnp.float32)) / denom

        # ---- expand word-token outputs to every feature position (pos -> group) ----
        expa = jnp.dot(segT, out_wtok, preferred_element_type=jnp.float32)   # (t_fea, hd)

        # ---- grouped softmax of the word-token column (per-group max: stable) ----
        s_wtok = jnp.sum(q_f * expa, axis=-1, keepdims=True)                 # (t_fea, 1)
        m_g = jnp.max(jnp.where(segT_b, s_wtok, -jnp.inf), axis=0, keepdims=True)  # (1, nw)
        m_pos = jnp.sum(jnp.where(segT_b, m_g, 0.0), axis=-1, keepdims=True)       # (t_fea,1)
        e = jnp.exp(s_wtok - m_pos)
        den_g = jnp.sum(jnp.where(segT_b, e, 0.0), axis=0, keepdims=True)          # (1, nw)
        den_pos = jnp.sum(jnp.where(segT_b, den_g, 0.0), axis=-1, keepdims=True)   # (t_fea,1)
        w_wtok = e / den_pos

        # ---- local-window feature attention (separate softmax over the window) ----
        if wpad:
            zpad = jnp.zeros((wpad, hd), jnp.float32)
            k_win = jnp.concatenate([zpad, k_f, zpad], axis=0)
            v_win = jnp.concatenate([zpad, v_f, zpad], axis=0)
        else:
            k_win, v_win = k_f, v_f
        scores = [jnp.sum(q_f * k_win[w:w + t_fea], axis=-1, keepdims=True)
                  for w in range(local_size)]
        m_loc = scores[0]
        for s in scores[1:]:
            m_loc = jnp.maximum(m_loc, s)
        den_loc = jnp.zeros_like(m_loc)
        num_loc = jnp.zeros((t_fea, hd), jnp.float32)
        for w in range(local_size):
            e_w = jnp.exp(scores[w] - m_loc)
            den_loc = den_loc + e_w
            num_loc = num_loc + e_w * v_win[w:w + t_fea]
        out_fea = w_wtok * expa + num_loc / den_loc

        head_outs.append(jnp.concatenate([out_wtok, out_fea], axis=0))       # (T, hd)

    o_ref[0] = jnp.concatenate(head_outs, axis=-1)                           # (T, E)


def speech_msa_pallas(qkv, seg, segT, *, num_heads, head_dim, num_wtok,
                      local_size, scaling):
    B, T, threeE = qkv.shape
    E = threeE // 3
    t_fea = T - num_wtok
    expand = -(-t_fea // num_wtok)
    kernel = functools.partial(
        _speech_msa_kernel, num_heads=num_heads, head_dim=head_dim,
        num_wtok=num_wtok, t_fea=t_fea, expand=expand, local_size=local_size,
        scaling=scaling, embed_dim=E)
    # rough per-batch-element flop count (segment attn + expand + local window)
    flops_per_b = num_heads * (4 * num_wtok * t_fea * head_dim
                               + 2 * t_fea * num_wtok * head_dim
                               + 4 * t_fea * head_dim * (local_size + 1))
    return pl.pallas_call(
        kernel,
        out_shape=jax.ShapeDtypeStruct((B, T, E), jnp.float32),
        grid=(B,),
        in_specs=[pl.BlockSpec((1, T, threeE), lambda b: (b, 0, 0)),
                  pl.BlockSpec((num_wtok, t_fea), lambda b: (0, 0)),
                  pl.BlockSpec((t_fea, num_wtok), lambda b: (0, 0))],
        out_specs=pl.BlockSpec((1, T, E), lambda b: (b, 0, 0)),
        compiler_params=pltpu.CompilerParams(
            dimension_semantics=("parallel",),
            vmem_limit_bytes=_VMEM_LIMIT),
        cost_estimate=pl.CostEstimate(
            flops=B * flops_per_b, transcendentals=B * num_heads * 3 * T,
            bytes_accessed=4 * B * T * (threeE + E)),
    )(qkv, seg, segT)


# ----------------------------- encoder forward -----------------------------

def encoder_forward_pallas(x, p, *, num_heads, num_wtok, local_size):
    """SpeechFormer_v2_Encoder.forward (eval mode, x_position=None)."""
    B, T, E = x.shape
    hd = E // num_heads
    scaling = float(hd) ** (-0.5)
    t_fea = T - num_wtok
    expand = -(-t_fea // num_wtok)

    x2d = x.reshape(B * T, E)                      # add_position(x, None) == x

    # one-time bf16 weight casts (MXU operands); biases / LN params stay f32
    wqkv = p["Wqkv"].astype(jnp.bfloat16)
    wout = p["Wout"].astype(jnp.bfloat16)
    w1 = p["W1"].astype(jnp.bfloat16)
    w2 = p["W2"].astype(jnp.bfloat16)

    # segment-membership masks, built once on the host (compile-time constants)
    grp = np.arange(t_fea) // expand
    seg_np = (grp[None, :] == np.arange(num_wtok)[:, None]).astype(np.float32)
    seg = jnp.asarray(seg_np)                      # (nw, t_fea)
    segT = jnp.asarray(np.ascontiguousarray(seg_np.T))   # (t_fea, nw)

    # --- Speech-MSA v2 (QKV projection -> per-batch all-head attention) ---
    qkv = linear_pallas(x2d, wqkv, p["bqkv"]).reshape(B, T, 3 * E)
    attn = speech_msa_pallas(qkv, seg, segT, num_heads=num_heads, head_dim=hd,
                             num_wtok=num_wtok, local_size=local_size,
                             scaling=scaling)
    attn2d = attn.reshape(B * T, E)

    # out-projection + dropout(id) + residual + LayerNorm1 (fused epilogue)
    x1 = linear_residual_layernorm_pallas(attn2d, wout, p["bout"], x2d,
                                          p["ln1_g"], p["ln1_b"])

    # FFN: fc1 -> ReLU -> fc2 -> residual -> LayerNorm2 (single fused kernel)
    x2 = ffn_residual_layernorm_pallas(x1, w1, p["b1"], w2, p["b2"],
                                       p["ln2_g"], p["ln2_b"])
    return x2.reshape(B, T, E)


# ------------------- pure-JAX f32 reference (mirrors PyTorch) -------------------

def _ref_layernorm(x, g, b, eps=_LN_EPS):
    mu = jnp.mean(x, axis=-1, keepdims=True)
    var = jnp.mean((x - mu) ** 2, axis=-1, keepdims=True)
    return (x - mu) / jnp.sqrt(var + eps) * g + b


def _ref_speech_msa(x, p, num_heads, local_size, num_wtok):
    B, T, E = x.shape
    hd = E // num_heads
    scaling = float(hd) ** (-0.5)
    qkv = x @ p["Wqkv"] + p["bqkv"]
    Q, K, V = jnp.split(qkv, 3, axis=-1)
    Q = Q * scaling

    def heads(z):
        return z.reshape(B, T, num_heads, hd).transpose(0, 2, 1, 3).reshape(B * num_heads, T, hd)

    Q, K, V = heads(Q), heads(K), heads(V)
    BH = B * num_heads
    nw = num_wtok
    Qw, Qf = Q[:, :nw], Q[:, nw:]
    Kw, Kf = K[:, :nw], K[:, nw:]
    Vw, Vf = V[:, :nw], V[:, nw:]
    t_fea = Qf.shape[1]
    pad_fea = t_fea % nw
    pad_len = (nw - pad_fea) if pad_fea else 0
    Kp = jnp.pad(Kf, ((0, 0), (0, pad_len), (0, 0))).reshape(BH, nw, -1, hd)
    Vp = jnp.pad(Vf, ((0, 0), (0, pad_len), (0, 0))).reshape(BH, nw, -1, hd)

    aw = jnp.einsum("bnd,bnkd->bnk", Qw, jnp.concatenate([Kw[:, :, None, :], Kp], axis=2))
    aw = jax.nn.softmax(aw, axis=-1)
    out_wtok = jnp.einsum("bnk,bnkd->bnd", aw, jnp.concatenate([Vw[:, :, None, :], Vp], axis=2))

    expand = -(-t_fea // nw)
    expa = jnp.repeat(out_wtok, expand, axis=1)[:, :t_fea]

    wpad = (local_size - 1) // 2
    Kfp = jnp.pad(Kf, ((0, 0), (wpad, wpad), (0, 0)))
    Vfp = jnp.pad(Vf, ((0, 0), (wpad, wpad), (0, 0)))
    Kov = jnp.stack([Kfp[:, w:w + t_fea] for w in range(local_size)], axis=2)
    Vov = jnp.stack([Vfp[:, w:w + t_fea] for w in range(local_size)], axis=2)

    s = jnp.einsum("btd,btkd->btk", Qf, jnp.concatenate([expa[:, :, None, :], Kov], axis=2))
    ww = s[:, :, 0]
    ww = jnp.pad(ww, ((0, 0), (0, pad_len)), constant_values=-jnp.inf)
    ww = jax.nn.softmax(ww.reshape(BH, nw, -1), axis=-1).reshape(BH, -1)[:, :t_fea]
    wf = jax.nn.softmax(s[:, :, 1:], axis=-1)
    attn = jnp.concatenate([ww[:, :, None], wf], axis=-1)
    out_fea = jnp.einsum("btk,btkd->btd", attn,
                         jnp.concatenate([expa[:, :, None, :], Vov], axis=2))
    out = jnp.concatenate([out_wtok, out_fea], axis=1)
    out = out.reshape(B, num_heads, T, hd).transpose(0, 2, 1, 3).reshape(B, T, E)
    return out @ p["Wout"] + p["bout"]


def encoder_forward_ref(x, p, *, num_heads, num_wtok, local_size):
    residual = x
    a = _ref_speech_msa(x, p, num_heads, local_size, num_wtok)
    x = _ref_layernorm(residual + a, p["ln1_g"], p["ln1_b"])
    residual = x
    h = jnp.maximum(x @ p["W1"] + p["b1"], 0.0)
    h = h @ p["W2"] + p["b2"]
    return _ref_layernorm(residual + h, p["ln2_g"], p["ln2_b"])


# ----------------------------- setup / main -----------------------------

def init_params(key, embed_dim, ffn_dim):
    ks = jax.random.split(key, 12)
    s = 0.05
    f32 = jnp.float32
    return {
        "Wqkv": s * jax.random.normal(ks[0], (embed_dim, 3 * embed_dim), f32),
        "bqkv": s * jax.random.normal(ks[1], (3 * embed_dim,), f32),
        "Wout": s * jax.random.normal(ks[2], (embed_dim, embed_dim), f32),
        "bout": s * jax.random.normal(ks[3], (embed_dim,), f32),
        "ln1_g": 1.0 + 0.1 * jax.random.normal(ks[4], (embed_dim,), f32),
        "ln1_b": 0.1 * jax.random.normal(ks[5], (embed_dim,), f32),
        "W1": s * jax.random.normal(ks[6], (embed_dim, ffn_dim), f32),
        "b1": s * jax.random.normal(ks[7], (ffn_dim,), f32),
        "W2": s * jax.random.normal(ks[8], (ffn_dim, embed_dim), f32),
        "b2": s * jax.random.normal(ks[9], (embed_dim,), f32),
        "ln2_g": 1.0 + 0.1 * jax.random.normal(ks[10], (embed_dim,), f32),
        "ln2_b": 0.1 * jax.random.normal(ks[11], (embed_dim,), f32),
    }


if __name__ == "__main__":
    # small config consistent with the module: embed_dim divisible by num_heads,
    # num_wtok > 0, T = num_wtok + t_fea with t_fea not a multiple of num_wtok
    # so the zero-padding path is exercised.
    B, T, E = 2, 18, 32
    NUM_HEADS, NUM_WTOK, LOCAL_SIZE, FFN = 4, 4, 3, 64

    key = jax.random.PRNGKey(0)
    k_param, k_x = jax.random.split(key)
    params = init_params(k_param, E, FFN)
    x = jax.random.normal(k_x, (B, T, E), jnp.float32)

    out = encoder_forward_pallas(x, params, num_heads=NUM_HEADS,
                                 num_wtok=NUM_WTOK, local_size=LOCAL_SIZE)
    out = jax.block_until_ready(out)

    ref = encoder_forward_ref(x, params, num_heads=NUM_HEADS,
                              num_wtok=NUM_WTOK, local_size=LOCAL_SIZE)
    ref = jax.block_until_ready(ref)

    # bf16 MXU operands with f32 accumulation -> compare against the f32
    # reference with a correspondingly relaxed tolerance.
    np.testing.assert_allclose(np.asarray(out), np.asarray(ref), rtol=2e-2, atol=2e-2)
    print("KERNEL_OK")
</pallas_src>

<mosaic_0001>
module attributes {stable_mosaic.version = 11 : i64} {
  func.func @_linear_kernel(%arg0: i32, %arg1: i32, %arg2: i32, %arg3: memref<36x32xf32, #tpu.memory_space<vmem>>, %arg4: memref<32x96xbf16, #tpu.memory_space<vmem>>, %arg5: memref<1x96xf32, #tpu.memory_space<vmem>>, %arg6: memref<36x96xf32, #tpu.memory_space<vmem>>, %arg7: memref<36x96xf32, #tpu.memory_space<vmem>>) attributes {dimension_semantics = [#tpu.dimension_semantics<parallel>, #tpu.dimension_semantics<parallel>, #tpu.dimension_semantics<arbitrary>], iteration_bounds = array<i64: 1, 1, 1>, scalar_prefetch = 0 : i64, scratch_operands = 1 : i64, tpu.core_type = #tpu.core_type<tc>, window_params = [{transform_indices = @transform_0, window_bounds = array<i64: 36, 32>}, {transform_indices = @transform_1, window_bounds = array<i64: 32, 96>}, {transform_indices = @transform_2, window_bounds = array<i64: 1, 96>}, {transform_indices = @transform_3, window_bounds = array<i64: 36, 96>}]} {
    %c0_i32 = arith.constant 0 : i32
    %0 = arith.cmpi eq, %arg2, %c0_i32 : i32
    %1 = arith.extui %0 : i1 to i32
    %c0_i32_0 = arith.constant 0 : i32
    %2 = arith.cmpi ne, %1, %c0_i32_0 : i32
    scf.if %2 {
      %cst_10 = arith.constant 0.000000e+00 : f32
      %13 = vector.broadcast %cst_10 : f32 to vector<36x96xf32>
      %c0_11 = arith.constant 0 : index
      %c0_12 = arith.constant 0 : index
      %14 = vector.load %arg7[%c0_11, %c0_12] : memref<36x96xf32, #tpu.memory_space<vmem>>, vector<36x96xf32>
      tpu.vector_store %arg7[%c0_11, %c0_12], %13 {strides = array<i32>} : memref<36x96xf32, #tpu.memory_space<vmem>>, vector<36x96xf32>,
    } else {
    }
    %c0 = arith.constant 0 : index
    %c0_1 = arith.constant 0 : index
    %3 = vector.load %arg7[%c0, %c0_1] : memref<36x96xf32, #tpu.memory_space<vmem>>, vector<36x96xf32>
    %c0_2 = arith.constant 0 : index
    %c0_3 = arith.constant 0 : index
    %4 = vector.load %arg3[%c0_2, %c0_3] : memref<36x32xf32, #tpu.memory_space<vmem>>, vector<36x32xf32>
    %5 = arith.truncf %4 : vector<36x32xf32> to vector<36x32xbf16>
    %c0_4 = arith.constant 0 : index
    %c0_5 = arith.constant 0 : index
    %6 = vector.load %arg4[%c0_4, %c0_5] : memref<32x96xbf16, #tpu.memory_space<vmem>>, vector<32x96xbf16>
    %cst = arith.constant dense<0.000000e+00> : vector<36x96xf32>
    %7 = tpu.matmul %5, %6, %cst {dimension_numbers = #tpu.dot_dimension_numbers<[1], [0], [0], [1], [0, 0, 1, 1], [], []>} : vector<36x32xbf16>, vector<32x96xbf16>, vector<36x96xf32> -> vector<36x96xf32>
    %8 = arith.addf %3, %7 : vector<36x96xf32>
    %c0_6 = arith.constant 0 : index
    %c0_7 = arith.constant 0 : index
    %9 = vector.load %arg7[%c0_6, %c0_7] : memref<36x96xf32, #tpu.memory_space<vmem>>, vector<36x96xf32>
    tpu.vector_store %arg7[%c0_6, %c0_7], %8 {strides = array<i32>} : memref<36x96xf32, #tpu.memory_space<vmem>>, vector<36x96xf32>,
    %c0_i32_8 = arith.constant 0 : i32
    %10 = arith.cmpi eq, %arg2, %c0_i32_8 : i32
    %11 = arith.extui %10 : i1 to i32
    %c0_i32_9 = arith.constant 0 : i32
    %12 = arith.cmpi ne, %11, %c0_i32_9 : i32
    scf.if %12 {
      %c0_10 = arith.constant 0 : index
      %c0_11 = arith.constant 0 : index
      %13 = vector.load %arg7[%c0_10, %c0_11] : memref<36x96xf32, #tpu.memory_space<vmem>>, vector<36x96xf32>
      %c0_12 = arith.constant 0 : index
      %c0_13 = arith.constant 0 : index
      %14 = vector.load %arg5[%c0_12, %c0_13] : memref<1x96xf32, #tpu.memory_space<vmem>>, vector<1x96xf32>
      %15 = vector.broadcast %14 : vector<1x96xf32> to vector<36x96xf32>
      %16 = arith.addf %13, %15 : vector<36x96xf32>
      %c0_14 = arith.constant 0 : index
      %c0_15 = arith.constant 0 : index
      %17 = vector.load %arg6[%c0_14, %c0_15] : memref<36x96xf32, #tpu.memory_space<vmem>>, vector<36x96xf32>
      tpu.vector_store %arg6[%c0_14, %c0_15], %16 {strides = array<i32>} : memref<36x96xf32, #tpu.memory_space<vmem>>, vector<36x96xf32>,
    } else {
    }
    return
  }
  func.func @transform_0(%arg0: i32, %arg1: i32, %arg2: i32) -> (i32, i32) {
    %c0_i32 = arith.constant 0 : i32
    return %arg0, %arg2 : i32, i32
  }
  func.func @transform_1(%arg0: i32, %arg1: i32, %arg2: i32) -> (i32, i32) {
    %c0_i32 = arith.constant 0 : i32
    return %arg2, %arg1 : i32, i32
  }
  func.func @transform_2(%arg0: i32, %arg1: i32, %arg2: i32) -> (i32, i32) {
    %c0_i32 = arith.constant 0 : i32
    %c0_i32_0 = arith.constant 0 : i32
    return %c0_i32, %arg1 : i32, i32
  }
  func.func @transform_3(%arg0: i32, %arg1: i32, %arg2: i32) -> (i32, i32) {
    %c0_i32 = arith.constant 0 : i32
    return %arg0, %arg1 : i32, i32
  }
}

</mosaic_0001>

<llo_original>
// kernel: tpu_custom_call.1
$region0: #{tpu_custom_call.1}
  #allocation0 [shape = 'u32[]', space=smem, size = 0x4, offset = 0x4, fixed_abs, tag = 'smem constant byte address 0x4 - core index']
  #allocation1 [shape = 'u32[72,128]{1,0:T(1,128)}', space=vmem, size = 0x9000, scoped, tag = 'internal scratch']
  #allocation2 [shape = 'f32[36,96]{1,0:T(8,128)}', space=vmem, size = 0x5000, scoped, tag = 'scratch operand']
  %s0 = inlined_call_operand.vmem [shape: f32[36,32], index: 0, kind: input, shape index: {}]
  %s1 = inlined_call_operand.vmem [shape: bf16[32,96], index: 1, kind: input, shape index: {}]
  %s2 = inlined_call_operand.vmem [shape: f32[1,96], index: 2, kind: input, shape index: {}]
  %s3 = inlined_call_operand.hbm [shape: f32[36,96], index: 3, kind: output, shape index: {}]
  %s4 = sld [smem:[#allocation0]]
  $region30: #{tpu_custom_call.1} parent=0
    _
  %s6 = ssub.s32 1, %s4
  %s7 = scalar_select 0, %s6, %s4
  $region1: #{tpu_custom_call.1} parent=0
    #allocation3 [shape = 'u8[20480]{0}', space=vmem, size = 0x5000, scoped, tag = 'output window, operand 0, single buffered']
    #allocation4 [shape = 's32[1]{0}', space=sflag, size = 0x4, scoped, tag = 'scoped memory for tpu_custom_call.1']
    %8 = vsyncpa [#allocation4], 0
    // Predicated region
    $region2: #{tpu_custom_call.1} parent=1 // pred_check
      _
    $region3: #{tpu_custom_call.1} parent=1 // pred_check_branch
      %10 = sbr.rel (0) target = $region5
    $region4: #{tpu_custom_call.1} parent=1 // pred_region
      _
    $region5: #{tpu_custom_call.1} parent=1 // pred_fallthru
      _
    // Predicated region
    $region6: #{tpu_custom_call.1} parent=1 // pred_check
      _
    $region7: #{tpu_custom_call.1} parent=1 // pred_check_branch
      %12 = sbr.rel (0) target = $region9
    $region8: #{tpu_custom_call.1} parent=1 // pred_region
      _
    $region9: #{tpu_custom_call.1} parent=1 // pred_fallthru
      _
    // Predicated region
    $region10: #{tpu_custom_call.1} parent=1 // pred_check
      _
    $region11: #{tpu_custom_call.1} parent=1 // pred_check_branch
      %14 = sbr.rel (0) target = $region13
    $region12: #{tpu_custom_call.1} parent=1 // pred_region
      _
    $region13: #{tpu_custom_call.1} parent=1 // pred_fallthru
      _
    %p16 = scmp.eq.s32.totalorder 0, 0
    // Predicated region
    $region14: #{tpu_custom_call.1} parent=1 // pred_check
      %p17 = pneg %p16
    $region15: #{tpu_custom_call.1} parent=1 // pred_check_branch
      %19 = sbr.rel (%p17) target = $region17
    $region16: #{tpu_custom_call.1} parent=1 // pred_region
      %vm20 = vcmask 785408
      %21 = vst.msk [vmem:[#allocation2] sm:$0xff] %vm20, 0.0
      %22 = vst.msk [vmem:[#allocation2 + $0x8] sm:$0xff] %vm20, 0.0
      %23 = vst.msk [vmem:[#allocation2 + $0x10] sm:$0xff] %vm20, 0.0
      %24 = vst.msk [vmem:[#allocation2 + $0x18] sm:$0xff] %vm20, 0.0
      %vm25 = vcmask 781312
      %26 = vst.msk [vmem:[#allocation2 + $0x20] sm:$0xf] %vm25, 0.0
    $region17: #{tpu_custom_call.1} parent=1 // pred_fallthru
      _
    %v27 = vld [vmem:[#allocation2] sm:$0xff]
    %v28 = vld [vmem:[#allocation2 + $0x8] sm:$0xff]
    %v29 = vld [vmem:[#allocation2 + $0x10] sm:$0xff]
    %v30 = vld [vmem:[#allocation2 + $0x18] sm:$0xff]
    %v31 = vld [vmem:[#allocation2 + $0x20] sm:$0xf]
    %v32 = vld [vmem:[%s0] sm:$0xff]
    %v33 = vld [vmem:[%s0 + $0x8] sm:$0xff]
    %v34 = vld [vmem:[%s0 + $0x10] sm:$0xff]
    %v35 = vld [vmem:[%s0 + $0x18] sm:$0xff]
    %v36 = vld [vmem:[%s0 + $0x20] sm:$0xf]
    %v37 = vpack.c.bf16 %v33, %v32
    %v38 = vpack.c.bf16 %v35, %v34
    %v39 = vpack.c.bf16 %v36, %v36
    %v40 = vld [vmem:[%s1] sm:$0xf]
    %v41 = vld [vmem:[%s1 + $0x4] sm:$0xf]
    %v42 = vld [vmem:[%s1 + $0x8] sm:$0xf]
    %v43 = vld [vmem:[%s1 + $0xc] sm:$0xf]
    %v48 = vunpack.c.l.b16 %v40
    %v49 = vunpack.c.l.b16 %v41
    %v50 = vunpack.c.l.b16 %v42
    %v51 = vunpack.c.l.b16 %v43
    %v52 = vpack.c.b16 %v49, %v48
    %v53 = vpack.c.b16 %v51, %v50
    %vm56 = vcmask 261120
    %v58 = vsel %vm56, %v37, 0
    %v61 = vsel %vm56, %v38, 0
    %v64 = vsel %vm56, %v39, 0
    %66 = vmatpush.bf16.msra.mxu0 0
    %67 = vmatpush.bf16.msra.mxu0 0
    %68 = vmatpush.bf16.msra.mxu0 0
    %69 = vmatpush.bf16.msra.mxu0 0
    %70 = vmatpush.bf16.msra.mxu0 0
    %71 = vmatpush.bf16.msra.mxu0 0
    %72 = vmatpush.bf16.msra.mxu0 %v53
    %73 = vmatpush.bf16.msra.mxu0 %v52
    %74 = vmatmul.bf16.gmra.mxu0 %v58
    %v75 = vpop.f32.mrf.mxu0
    %v76 = vadd.f32 0.0, %v75
    %v77 = vpop.f32.mrf.mxu0
    %v78 = vadd.f32 0.0, %v77
    %79 = vmatmul.bf16.gmra.mxu0 %v61
    %v80 = vpop.f32.mrf.mxu0
    %v81 = vadd.f32 0.0, %v80
    %v82 = vpop.f32.mrf.mxu0
    %v83 = vadd.f32 0.0, %v82
    %84 = vmatmul.bf16.gmra.mxu0 %v64
    %v85 = vpop.f32.mrf.mxu0
    %v86 = vadd.f32 0.0, %v85
    %v87 = vpop.f32.mrf.mxu0
    %88 = vdwg.mxu0
    %v89 = vadd.f32 %v27, %v76
    %v90 = vadd.f32 %v28, %v78
    %v91 = vadd.f32 %v29, %v81
    %v92 = vadd.f32 %v30, %v83
    %v93 = vadd.f32 %v31, %v86
    %vm94 = vcmask 785408
    %95 = vst.msk [vmem:[#allocation2] sm:$0xff] %vm94, %v89
    %96 = vst.msk [vmem:[#allocation2 + $0x8] sm:$0xff] %vm94, %v90
    %97 = vst.msk [vmem:[#allocation2 + $0x10] sm:$0xff] %vm94, %v91
    %98 = vst.msk [vmem:[#allocation2 + $0x18] sm:$0xff] %vm94, %v92
    %vm99 = vcmask 781312
    %100 = vst.msk [vmem:[#allocation2 + $0x20] sm:$0xf] %vm99, %v93
    // Predicated region
    $region18: #{tpu_custom_call.1} parent=1 // pred_check
      %p101 = pneg %p16
    $region19: #{tpu_custom_call.1} parent=1 // pred_check_branch
      %103 = sbr.rel (%p101) target = $region21
    $region20: #{tpu_custom_call.1} parent=1 // pred_region
      %v104 = vld [vmem:[#allocation2] sm:$0xff]
      %v105 = vld [vmem:[#allocation2 + $0x8] sm:$0xff]
      %v106 = vld [vmem:[#allocation2 + $0x10] sm:$0xff]
      %v107 = vld [vmem:[#allocation2 + $0x18] sm:$0xff]
      %v108 = vld [vmem:[#allocation2 + $0x20] sm:$0xf]
      %v109 = vld [vmem:[%s2] sm:$0x1]
      %v111 = vperm.slane %v109, 0
      %v113 = vadd.f32 %v104, %v111
      %v114 = vadd.f32 %v105, %v111
      %v115 = vadd.f32 %v106, %v111
      %v116 = vadd.f32 %v107, %v111
      %v117 = vadd.f32 %v108, %v111
      %118 = vst.msk [vmem:[#allocation3] sm:$0xff] %vm94, %v113
      %119 = vst.msk [vmem:[#allocation3 + $0x8] sm:$0xff] %vm94, %v114
      %120 = vst.msk [vmem:[#allocation3 + $0x10] sm:$0xff] %vm94, %v115
      %121 = vst.msk [vmem:[#allocation3 + $0x18] sm:$0xff] %vm94, %v116
      %122 = vst.msk [vmem:[#allocation3 + $0x20] sm:$0xf] %vm99, %v117
    $region21: #{tpu_custom_call.1} parent=1 // pred_fallthru
      _
    // Predicated region
    $region22: #{tpu_custom_call.1} parent=1 // pred_check
      _
    $region23: #{tpu_custom_call.1} parent=1 // pred_check_branch
      %124 = sbr.rel (0) target = $region25
    $region24: #{tpu_custom_call.1} parent=1 // pred_region
      %126 = vsyncadd [#allocation4], 0
      %s127 = sshll.u32 [#allocation3], 4
      %s128 = int_to_ptr.vmem [resolvable:$true] %s127
      %s129 = sshll.u32 %s3, 4
      %s130 = int_to_ptr.hbm [resolvable:$true] %s129
      %135 = dma.vmem_to_hbm [thread:$0]  %s128, 640, %s130, [#allocation4], 128, 128, 8
    $region25: #{tpu_custom_call.1} parent=1 // pred_fallthru
      _
    // Predicated region
    $region26: #{tpu_custom_call.1} parent=1 // pred_check
      _
    $region27: #{tpu_custom_call.1} parent=1 // pred_check_branch
      %137 = sbr.rel (0) target = $region29
    $region28: #{tpu_custom_call.1} parent=1 // pred_region
      %139 = dma.done [#allocation4], 640
    $region29: #{tpu_custom_call.1} parent=1 // pred_fallthru
      _
    %140 = vsyncpa [#allocation4], 1

</llo_original>
